<compile_context>
chip_gen: v7x
topology: tpu7x:2x2x1
jax: 0.10.0
libtpu: 0.0.40
codegen_flags: <defaults>
</compile_context>

<pallas_src>
import functools

import jax
import jax.numpy as jnp
from jax import lax
from jax.experimental import pallas as pl
from jax.experimental.pallas import tpu as pltpu


def _decoder_kernel(z_row_ref, z_col_ref, adj_ref, *, operand_dtype,
                    approx_sigmoid):
    # Leading block dim of size 1 == one batch element; squeeze it by indexing.
    zr = z_row_ref[0]          # [TM, F]  rows "n" of this output tile
    zc = z_col_ref[0]          # [TN, F]  rows "p" of this output tile
    if operand_dtype is not None and zr.dtype != operand_dtype:
        zr = zr.astype(operand_dtype)
        zc = zc.astype(operand_dtype)

    # einsum('nf,pf->np'): contract on the last axis of both operands.
    # No transpose materialized; MXU accumulates in f32.
    logits = lax.dot_general(
        zr, zc,
        dimension_numbers=(((1,), (1,)), ((), ())),
        preferred_element_type=jnp.float32,
    )
    if approx_sigmoid:
        # exp and the reciprocal both land on the EUP slot; not bit-identical
        # to jax.nn.sigmoid, so it is opt-in.
        adj = pl.reciprocal(1.0 + jnp.exp(-logits), approx=True)
    else:
        adj = jax.nn.sigmoid(logits)
    adj_ref[0] = adj.astype(adj_ref.dtype)


def _round_down(x, m):
    return (x // m) * m


def _choose_tiles(N, F, op_bytes, out_bytes, row_tile, col_tile, vmem_budget):
    """Pick (TM, TN): aligned tiles (mult of 8 / 128) whenever N exceeds the
    requested tile, full-dim otherwise.  Edge blocks are handled by a cdiv
    grid with masked stores -- never a full-N fallback.  Tiles are shrunk
    until the double-buffered working set fits the VMEM budget."""
    TM = N if N <= row_tile else max(8, _round_down(row_tile, 8))
    TN = N if N <= col_tile else max(128, _round_down(col_tile, 128))

    def working_set(tm, tn):
        # 2x for double-buffered pipelining of output tile + both input slabs.
        return 2 * (tm * tn * out_bytes + (tm + tn) * F * op_bytes)

    while working_set(TM, TN) > vmem_budget:
        new_tn = max(128, _round_down(TN // 2, 128))
        if TN >= TM and new_tn < TN:
            TN = new_tn
            continue
        new_tm = max(8, _round_down(TM // 2, 8))
        if new_tm < TM:
            TM = new_tm
            continue
        break
    return TM, TN


def inner_product_decoder_forward(z, *, row_tile=512, col_tile=1024,
                                  out_dtype=None, use_bf16_operands=None,
                                  approx_sigmoid=False,
                                  vmem_budget_bytes=24 << 20):
    """adj = sigmoid(einsum('inf,ipf->inp', z, z)); dropout is identity (eval)."""
    B, N, F = z.shape
    out_dtype = jnp.dtype(z.dtype if out_dtype is None else out_dtype)
    op_bytes = jnp.dtype(z.dtype).itemsize
    out_bytes = out_dtype.itemsize

    # bf16 operands (f32 accumulation) only help once the MXU binds (large F)
    # or when z is already bf16; keep strict f32 parity otherwise.
    if use_bf16_operands is None:
        use_bf16_operands = (z.dtype == jnp.bfloat16) or (F >= 256)
    operand_dtype = jnp.bfloat16 if use_bf16_operands else None

    TM, TN = _choose_tiles(N, F, op_bytes, out_bytes, row_tile, col_tile,
                           vmem_budget_bytes)
    nr = pl.cdiv(N, TM)
    nc = pl.cdiv(N, TN)

    # v7x megacore guard: make sure both TensorCores get at least one step.
    if B * nr * nc < 2 and N >= 16:
        TM = max(8, _round_down(N // 2, 8))
        nr = pl.cdiv(N, TM)

    # Row-tile axis innermost: the larger (TN x F) column slab keeps the same
    # block index across the inner loop and is NOT re-DMA'd; only the smaller
    # (TM x F) row slab moves every step.
    grid = (B, nc, nr)

    kernel = functools.partial(
        _decoder_kernel,
        operand_dtype=operand_dtype,
        approx_sigmoid=approx_sigmoid,
    )

    grid_spec = pltpu.PrefetchScalarGridSpec(
        num_scalar_prefetch=0,
        grid=grid,
        in_specs=[
            # Row slab of z: output rows of this tile (re-fetched per inner step).
            pl.BlockSpec((1, TM, F), lambda b, jc, ir: (b, ir, 0)),
            # Column slab of z: resident across the inner (row) axis.
            pl.BlockSpec((1, TN, F), lambda b, jc, ir: (b, jc, 0)),
        ],
        out_specs=pl.BlockSpec((1, TM, TN), lambda b, jc, ir: (b, ir, jc)),
    )

    working_set = 2 * (TM * TN * out_bytes + (TM + TN) * F * op_bytes)
    # Explicit VMEM cap: enough for the double-buffered working set + headroom,
    # clamped so it is safe on v7x (64 MiB physical VMEM).
    vmem_limit = int(min(max(working_set + (4 << 20), 32 << 20), 64 << 20))

    cost = pl.CostEstimate(
        flops=int(2 * B * N * N * F),
        transcendentals=int(B * N * N),          # one exp per output element
        # Column slab: read once per batch.  Row slab: re-read once per column
        # tile.  Plus the full output writeback in its actual dtype.
        bytes_accessed=int(B * N * F * op_bytes * (1 + nc)
                           + B * N * N * out_bytes),
    )

    return pl.pallas_call(
        kernel,
        out_shape=jax.ShapeDtypeStruct((B, N, N), out_dtype),
        grid_spec=grid_spec,
        compiler_params=pltpu.CompilerParams(
            dimension_semantics=("parallel", "parallel", "parallel"),
            vmem_limit_bytes=vmem_limit),
        cost_estimate=cost,
    )(z, z)


def reference_forward(z):
    return jax.nn.sigmoid(jnp.einsum("inf,ipf->inp", z, z))


if __name__ == "__main__":
    # Small shapes consistent with the module: batch of 2 graphs, 128 nodes,
    # 32 latent features (lane-aligned fast path).
    B, N, F = 2, 128, 32
    key = jax.random.PRNGKey(0)
    z = jax.random.normal(key, (B, N, F), dtype=jnp.float32)

    adj = inner_product_decoder_forward(z)
    jax.block_until_ready(adj)
    ref = reference_forward(z)
    assert adj.shape == (B, N, N) and adj.dtype == jnp.float32
    assert jnp.allclose(adj, ref, atol=1e-4, rtol=1e-4)

    # Unaligned N: exercises the cdiv grid / masked edge-block path that
    # replaced the old "full-N fallback" (small tiles force multiple blocks).
    B2, N2, F2 = 1, 200, 24
    z2 = jax.random.normal(jax.random.PRNGKey(1), (B2, N2, F2),
                           dtype=jnp.float32)
    adj2 = inner_product_decoder_forward(z2, row_tile=64, col_tile=128)
    jax.block_until_ready(adj2)
    ref2 = reference_forward(z2)
    assert adj2.shape == (B2, N2, N2)
    assert jnp.allclose(adj2, ref2, atol=1e-4, rtol=1e-4)

    print("KERNEL_OK")
</pallas_src>

<mosaic_0001>
module attributes {stable_mosaic.version = 11 : i64} {
  func.func @_decoder_kernel(%arg0: i32, %arg1: i32, %arg2: i32, %arg3: memref<1x128x32xf32, #tpu.memory_space<vmem>>, %arg4: memref<1x128x32xf32, #tpu.memory_space<vmem>>, %arg5: memref<1x128x128xf32, #tpu.memory_space<vmem>>) attributes {dimension_semantics = [#tpu.dimension_semantics<parallel>, #tpu.dimension_semantics<parallel>, #tpu.dimension_semantics<parallel>], iteration_bounds = array<i64: 2, 1, 1>, scalar_prefetch = 0 : i64, scratch_operands = 0 : i64, tpu.core_type = #tpu.core_type<tc>, window_params = [{transform_indices = @transform_0, window_bounds = array<i64: 1, 128, 32>}, {transform_indices = @transform_1, window_bounds = array<i64: 1, 128, 32>}, {transform_indices = @transform_2, window_bounds = array<i64: 1, 128, 128>}]} {
    %c0 = arith.constant 0 : index
    %c0_0 = arith.constant 0 : index
    %c0_1 = arith.constant 0 : index
    %0 = vector.load %arg3[%c0, %c0_0, %c0_1] : memref<1x128x32xf32, #tpu.memory_space<vmem>>, vector<1x128x32xf32>
    %1 = vector.shape_cast %0 : vector<1x128x32xf32> to vector<128x32xf32>
    %c0_2 = arith.constant 0 : index
    %c0_3 = arith.constant 0 : index
    %c0_4 = arith.constant 0 : index
    %2 = vector.load %arg4[%c0_2, %c0_3, %c0_4] : memref<1x128x32xf32, #tpu.memory_space<vmem>>, vector<1x128x32xf32>
    %3 = vector.shape_cast %2 : vector<1x128x32xf32> to vector<128x32xf32>
    %cst = arith.constant dense<0.000000e+00> : vector<128x128xf32>
    %4 = tpu.matmul %1, %3, %cst {dimension_numbers = #tpu.dot_dimension_numbers<[1], [1], [0], [0], [0, 0, 1, 0], [], []>} : vector<128x32xf32>, vector<128x32xf32>, vector<128x128xf32> -> vector<128x128xf32>
    %5 = arith.negf %4 : vector<128x128xf32>
    %6 = math.exp %5 : vector<128x128xf32>
    %cst_5 = arith.constant 1.000000e+00 : f32
    %7 = vector.broadcast %cst_5 : f32 to vector<128x128xf32>
    %8 = arith.addf %7, %6 : vector<128x128xf32>
    %9 = arith.divf %7, %8 : vector<128x128xf32>
    %c0_6 = arith.constant 0 : index
    %c0_7 = arith.constant 0 : index
    %c0_8 = arith.constant 0 : index
    %10 = vector.load %arg5[%c0_6, %c0_7, %c0_8] : memref<1x128x128xf32, #tpu.memory_space<vmem>>, vector<1x128x128xf32>
    %11 = vector.shape_cast %10 : vector<1x128x128xf32> to vector<128x128xf32>
    %12 = vector.shape_cast %9 : vector<128x128xf32> to vector<1x128x128xf32>
    tpu.vector_store %arg5[%c0_6, %c0_7, %c0_8], %12 {strides = array<i32>} : memref<1x128x128xf32, #tpu.memory_space<vmem>>, vector<1x128x128xf32>,
    return
  }
  func.func @transform_0(%arg0: i32, %arg1: i32, %arg2: i32) -> (i32, i32, i32) {
    %c0_i32 = arith.constant 0 : i32
    %c0_i32_0 = arith.constant 0 : i32
    return %arg0, %arg2, %c0_i32 : i32, i32, i32
  }
  func.func @transform_1(%arg0: i32, %arg1: i32, %arg2: i32) -> (i32, i32, i32) {
    %c0_i32 = arith.constant 0 : i32
    %c0_i32_0 = arith.constant 0 : i32
    return %arg0, %arg1, %c0_i32 : i32, i32, i32
  }
  func.func @transform_2(%arg0: i32, %arg1: i32, %arg2: i32) -> (i32, i32, i32) {
    %c0_i32 = arith.constant 0 : i32
    return %arg0, %arg2, %arg1 : i32, i32, i32
  }
}

</mosaic_0001>

<llo_original>
// kernel: tpu_custom_call.1
$region0: #{tpu_custom_call.1}
  #allocation0 [shape = 'u32[]', space=smem, size = 0x4, offset = 0x4, fixed_abs, tag = 'smem constant byte address 0x4 - core index']
  #allocation1 [shape = 'u32[144,128]{1,0:T(1,128)}', space=vmem, size = 0x12000, scoped, tag = 'internal scratch']
  %s0 = inlined_call_operand.vmem [shape: f32[2,128,32], index: 0, kind: input, shape index: {}]
  %s1 = inlined_call_operand.vmem [shape: f32[2,128,32], index: 1, kind: input, shape index: {}]
  %s2 = inlined_call_operand.hbm [shape: f32[2,128,128], index: 2, kind: output, shape index: {}]
  %s3 = sld [smem:[#allocation0]]
  $region41: #{tpu_custom_call.1} parent=0
    _
  %s5 = ssub.s32 1, %s3
  %s6 = scalar_select 0, %s5, %s3
  $region1: #{tpu_custom_call.1} parent=0
    #allocation2 [shape = 'u8[131072]{0}', space=vmem, size = 0x20000, scoped, tag = 'output window, operand 0']
    #allocation3 [shape = 's32[2]{0}', space=sflag, size = 0x8, scoped, tag = 'scoped memory for tpu_custom_call.1']
    %7 = vsyncpa [#allocation3], 0
    %s8 = scalar_lea.sflag [#allocation3], 1
    %9 = vsyncpa %s8, 0
    loop: start=0, step=1, limit=4
    $region2: #{tpu_custom_call.1} parent=1 // loop_pre_header
      _
    $region3: #{tpu_custom_call.1} parent=1 // loop_header
      %s11 = sphi 0, %s15
      %p12 = scmp.ge.s32.totalorder %s11, 4
      %s18 = sphi 0, %s37
      %s19 = sphi 0, %s33
      %s20 = sphi 0, %s29
      %s21 = sphi 0, %s18
      %s22 = sphi 0, %s19
      %s23 = sphi 0, %s20
      %s24 = sphi 0, %s21
      %s25 = sphi 0, %s22
      %s26 = sphi 0, %s23
      %s42 = sphi 0, %s44
      %s45 = sphi 0, %s42
      %s46 = sphi 0, %s45
      %s62 = sphi 0, %s46
      %s70 = sphi 0, %s72
      %s73 = sphi 0, %s70
      %s74 = sphi 0, %s73
      %s90 = sphi 0, %s74
      %s100 = sphi 0, %s102
      %s103 = sphi 0, %s100
      %s104 = sphi 0, %s103
      %s120 = sphi 0, %s104
    $region4: #{tpu_custom_call.1} parent=1 // loop_header_branch
      %14 = sbr.rel (%p12) target = $region8
    $region5: #{tpu_custom_call.1} parent=1 // loop_body
      %s16 = ssub.s32 %s11, 1
      %s17 = ssub.s32 %s11, 2
      %s27 = sadd.s32 1, %s20
      %p28 = scmp.ge.s32.totalorder %s27, 1
      %s29 = scalar_select %p28, 0, %s27
      %s30 = sadd.s32 1, %s19
      %s31 = scalar_select %p28, %s30, %s19
      %p32 = scmp.ge.s32.totalorder %s31, 1
      %s33 = scalar_select %p32, 0, %s31
      %s34 = sadd.s32 1, %s18
      %s35 = scalar_select %p32, %s34, %s18
      %p36 = scmp.ge.s32.totalorder %s35, 2
      %s37 = scalar_select %p36, 0, %s35
      %s38 = ssub.s32 %s18, %s37
      %s39 = ssub.s32 %s20, %s29
      %s40 = sor.u32 %s38, %s39
      %p41 = scmp.eq.s32.totalorder %s40, 0
      %s43 = sadd.s32 %s42, 1
      %s44 = scalar_select %p41, %s42, %s43
      %p47 = pneg %p41
      %p48 = scmp.eq.s32.totalorder %s11, 1
      %p49 = por %p47, %p48
      %p50 = scmp.ne.s32.totalorder %s42, %s45
      %p51 = scmp.eq.s32.totalorder %s11, 0
      %p52 = por %p50, %p51
      %p53 = scmp.ne.s32.totalorder %s42, %s45
      %p54 = scmp.eq.s32.totalorder %s16, 1
      %p55 = por %p53, %p54
      %p56 = scmp.ne.s32.totalorder %s45, %s46
      %p57 = scmp.eq.s32.totalorder %s16, 0
      %p58 = por %p56, %p57
      %p59 = scmp.ne.s32.totalorder %s45, %s46
      %p60 = scmp.eq.s32.totalorder %s17, 1
      %p61 = por %p59, %p60
      %p63 = scmp.ne.s32.totalorder %s46, %s62
      %p64 = scmp.eq.s32.totalorder %s17, 0
      %p65 = por %p63, %p64
      %s66 = ssub.s32 %s18, %s37
      %s67 = ssub.s32 %s19, %s33
      %s68 = sor.u32 %s66, %s67
      %p69 = scmp.eq.s32.totalorder %s68, 0
      %s71 = sadd.s32 %s70, 1
      %s72 = scalar_select %p69, %s70, %s71
      %p75 = pneg %p69
      %p76 = scmp.eq.s32.totalorder %s11, 1
      %p77 = por %p75, %p76
      %p78 = scmp.ne.s32.totalorder %s70, %s73
      %p79 = scmp.eq.s32.totalorder %s11, 0
      %p80 = por %p78, %p79
      %p81 = scmp.ne.s32.totalorder %s70, %s73
      %p82 = scmp.eq.s32.totalorder %s16, 1
      %p83 = por %p81, %p82
      %p84 = scmp.ne.s32.totalorder %s73, %s74
      %p85 = scmp.eq.s32.totalorder %s16, 0
      %p86 = por %p84, %p85
      %p87 = scmp.ne.s32.totalorder %s73, %s74
      %p88 = scmp.eq.s32.totalorder %s17, 1
      %p89 = por %p87, %p88
      %p91 = scmp.ne.s32.totalorder %s74, %s90
      %p92 = scmp.eq.s32.totalorder %s17, 0
      %p93 = por %p91, %p92
      %s94 = ssub.s32 %s18, %s37
      %s95 = ssub.s32 %s20, %s29
      %s96 = sor.u32 %s94, %s95
      %s97 = ssub.s32 %s19, %s33
      %s98 = sor.u32 %s96, %s97
      %p99 = scmp.eq.s32.totalorder %s98, 0
      %s101 = sadd.s32 %s100, 1
      %s102 = scalar_select %p99, %s100, %s101
      %p105 = pneg %p99
      %p106 = scmp.eq.s32.totalorder %s11, 1
      %p107 = por %p105, %p106
      %p108 = scmp.ne.s32.totalorder %s100, %s103
      %p109 = scmp.eq.s32.totalorder %s11, 0
      %p110 = por %p108, %p109
      %p111 = scmp.ne.s32.totalorder %s100, %s103
      %p112 = scmp.eq.s32.totalorder %s16, 1
      %p113 = por %p111, %p112
      %p114 = scmp.ne.s32.totalorder %s103, %s104
      %p115 = scmp.eq.s32.totalorder %s16, 0
      %p116 = por %p114, %p115
      %p117 = scmp.ne.s32.totalorder %s103, %s104
      %p118 = scmp.eq.s32.totalorder %s17, 1
      %p119 = por %p117, %p118
      %p121 = scmp.ne.s32.totalorder %s104, %s120
      %p122 = scmp.eq.s32.totalorder %s17, 0
      %p123 = por %p121, %p122
      %p124 = scmp.le.s32.totalorder 1, %s11
      %p125 = scmp.lt.s32.totalorder %s11, 3
      %p126 = pnand %p124, %p125
      %p127 = pneg %p126
      // Predicated region
      $region9: #{tpu_custom_call.1} parent=5 // pred_check
        _
      $region10: #{tpu_custom_call.1} parent=5 // pred_check_branch
        %129 = sbr.rel (%p126) target = $region12
      $region11: #{tpu_custom_call.1} parent=5 // pred_region
        %s130 = ssub.s32 %s11, 1
      $region12: #{tpu_custom_call.1} parent=5 // pred_fallthru
        _
      %p131 = scmp.lt.s32.totalorder %s11, 2
      // Predicated region
      $region13: #{tpu_custom_call.1} parent=5 // pred_check
        %p132 = pneg %p131
      $region14: #{tpu_custom_call.1} parent=5 // pred_check_branch
        %134 = sbr.rel (%p132) target = $region16
      $region15: #{tpu_custom_call.1} parent=5 // pred_region
        // Predicated region
        $region17: #{tpu_custom_call.1} parent=15 // pred_check
          %p135 = pneg %p52
        $region18: #{tpu_custom_call.1} parent=15 // pred_check_branch
          %137 = sbr.rel (%p135) target = $region20
        $region19: #{tpu_custom_call.1} parent=15 // pred_region
          %s138 = smul.u32 16, %s20
          %p139 = scmp.lt.s32.totalorder %s18, 1
          %s140 = scalar_select %p139, %s18, 1
          %p141 = scmp.lt.s32.totalorder %s138, 15
          %s142 = scalar_select %p141, %s138, 15
          %s143 = smul.addr %s140, 16
          %s144 = sadd.s32 %s142, %s143
          %s145 = smul.addr %s144, 8
          %s146 = scalar_lea.vmem %s0, %s145
          %s147 = smul.u32 16, %s20
        $region20: #{tpu_custom_call.1} parent=15 // pred_fallthru
          _
        // Predicated region
        $region21: #{tpu_custom_call.1} parent=15 // pred_check
          %p148 = pneg %p80
        $region22: #{tpu_custom_call.1} parent=15 // pred_check_branch
          %150 = sbr.rel (%p148) target = $region24
        $region23: #{tpu_custom_call.1} parent=15 // pred_region
          %s151 = smul.u32 16, %s19
          %p152 = scmp.lt.s32.totalorder %s18, 1
          %s153 = scalar_select %p152, %s18, 1
          %p154 = scmp.lt.s32.totalorder %s151, 15
          %s155 = scalar_select %p154, %s151, 15
          %s156 = smul.addr %s153, 16
          %s157 = sadd.s32 %s155, %s156
          %s158 = smul.addr %s157, 8
          %s159 = scalar_lea.vmem %s1, %s158
          %s160 = smul.u32 16, %s19
        $region24: #{tpu_custom_call.1} parent=15 // pred_fallthru
          _
      $region16: #{tpu_custom_call.1} parent=5 // pred_fallthru
        _
      %p161 = scmp.le.s32.totalorder 1, %s11
      %p162 = scmp.lt.s32.totalorder %s11, 3
      %p163 = pnand %p161, %p162
      %p164 = pneg %p163
      // Predicated region
      $region25: #{tpu_custom_call.1} parent=5 // pred_check
        _
      $region26: #{tpu_custom_call.1} parent=5 // pred_check_branch
        %166 = sbr.rel (%p163) target = $region28
      $region27: #{tpu_custom_call.1} parent=5 // pred_region
        %s167 = ssub.s32 %s11, 1
        %s168 = smul.u32 16, %s23
        %p169 = scmp.lt.s32.totalorder %s21, 1
        %s170 = scalar_select %p169, %s21, 1
        %p171 = scmp.lt.s32.totalorder %s168, 15
        %s172 = scalar_select %p171, %s168, 15
        %s173 = smul.addr %s170, 16
        %s174 = sadd.s32 %s172, %s173
        %s175 = smul.addr %s174, 8
        %s176 = scalar_lea.vmem %s0, %s175
        %p177 = pneg %p58
        %p178 = pneg %p55
        %s179 = smul.u32 16, %s22
        %p180 = scmp.lt.s32.totalorder %s21, 1
        %s181 = scalar_select %p180, %s21, 1
        %p182 = scmp.lt.s32.totalorder %s179, 15
        %s183 = scalar_select %p182, %s179, 15
        %s184 = smul.addr %s181, 16
        %s185 = sadd.s32 %s183, %s184
        %s186 = smul.addr %s185, 8
        %s187 = scalar_lea.vmem %s1, %s186
        %p188 = pneg %p86
        %p189 = pneg %p83
        %p190 = pneg %p116
        %p191 = pneg %p113
        %s192 = sand.u32 %s103, 1
        %s193 = scalar_lea.sflag [#allocation3], %s192
        %s194 = sand.u32 %s103, 1
        %s195 = smul.addr %s194, 128
        %s196 = scalar_lea.vmem [#allocation2], %s195
        %s197 = smul.u32 16, %s23
        %p198 = scmp.lt.s32.totalorder %s21, 1
        %s199 = scalar_select %p198, %s21, 1
        %p200 = scmp.lt.s32.totalorder %s197, 15
        %s201 = scalar_select %p200, %s197, 15
        %s202 = smul.addr %s199, 16
        %s203 = sadd.s32 %s201, %s202
        %s204 = smul.addr %s203, 8
        %s205 = scalar_lea.vmem %s0, %s204
        %s206 = smul.u32 16, %s23
        %s207 = smul.u32 16, %s22
        %p208 = scmp.lt.s32.totalorder %s21, 1
        %s209 = scalar_select %p208, %s21, 1
        %p210 = scmp.lt.s32.totalorder %s207, 15
        %s211 = scalar_select %p210, %s207, 15
        %s212 = smul.addr %s209, 16
        %s213 = sadd.s32 %s211, %s212
        %s214 = smul.addr %s213, 8
        %s215 = scalar_lea.vmem %s1, %s214
        %s216 = smul.u32 16, %s22
        %s217 = smul.u32 16, %s23
        %v218 = vld [vmem:[%s205] sm:$0xff]
        %v219 = vld [vmem:[%s205 + $0x8] sm:$0xff]
        %v220 = vld [vmem:[%s205 + $0x10] sm:$0xff]
        %v221 = vld [vmem:[%s205 + $0x18] sm:$0xff]
        %v222 = vld [vmem:[%s205 + $0x20] sm:$0xff]
        %v223 = vld [vmem:[%s205 + $0x28] sm:$0xff]
        %v224 = vld [vmem:[%s205 + $0x30] sm:$0xff]
        %v225 = vld [vmem:[%s205 + $0x38] sm:$0xff]
        %v226 = vld [vmem:[%s205 + $0x40] sm:$0xff]
        %v227 = vld [vmem:[%s205 + $0x48] sm:$0xff]
        %v228 = vld [vmem:[%s205 + $0x50] sm:$0xff]
        %v229 = vld [vmem:[%s205 + $0x58] sm:$0xff]
        %v230 = vld [vmem:[%s205 + $0x60] sm:$0xff]
        %v231 = vld [vmem:[%s205 + $0x68] sm:$0xff]
        %v232 = vld [vmem:[%s205 + $0x70] sm:$0xff]
        %v233 = vld [vmem:[%s205 + $0x78] sm:$0xff]
        %v234 = vld [vmem:[%s215] sm:$0xff]
        %v235 = vld [vmem:[%s215 + $0x8] sm:$0xff]
        %v236 = vld [vmem:[%s215 + $0x10] sm:$0xff]
        %v237 = vld [vmem:[%s215 + $0x18] sm:$0xff]
        %v238 = vld [vmem:[%s215 + $0x20] sm:$0xff]
        %v239 = vld [vmem:[%s215 + $0x28] sm:$0xff]
        %v240 = vld [vmem:[%s215 + $0x30] sm:$0xff]
        %v241 = vld [vmem:[%s215 + $0x38] sm:$0xff]
        %v242 = vld [vmem:[%s215 + $0x40] sm:$0xff]
        %v243 = vld [vmem:[%s215 + $0x48] sm:$0xff]
        %v244 = vld [vmem:[%s215 + $0x50] sm:$0xff]
        %v245 = vld [vmem:[%s215 + $0x58] sm:$0xff]
        %v246 = vld [vmem:[%s215 + $0x60] sm:$0xff]
        %v247 = vld [vmem:[%s215 + $0x68] sm:$0xff]
        %v248 = vld [vmem:[%s215 + $0x70] sm:$0xff]
        %v249 = vld [vmem:[%s215 + $0x78] sm:$0xff]
        %vm250 = vcmask 261120
        %v252 = vsel %vm250, %v218, 0
        %v255 = vsel %vm250, %v219, 0
        %v258 = vsel %vm250, %v220, 0
        %v261 = vsel %vm250, %v221, 0
        %v264 = vsel %vm250, %v222, 0
        %v267 = vsel %vm250, %v223, 0
        %v270 = vsel %vm250, %v224, 0
        %v273 = vsel %vm250, %v225, 0
        %v276 = vsel %vm250, %v226, 0
        %v279 = vsel %vm250, %v227, 0
        %v282 = vsel %vm250, %v228, 0
        %v285 = vsel %vm250, %v229, 0
        %v288 = vsel %vm250, %v230, 0
        %v291 = vsel %vm250, %v231, 0
        %v294 = vsel %vm250, %v232, 0
        %v297 = vsel %vm250, %v233, 0
        %v300 = vsel %vm250, %v234, 0
        %v303 = vsel %vm250, %v235, 0
        %v306 = vsel %vm250, %v236, 0
        %v309 = vsel %vm250, %v237, 0
        %v312 = vsel %vm250, %v238, 0
        %v315 = vsel %vm250, %v239, 0
        %v318 = vsel %vm250, %v240, 0
        %v321 = vsel %vm250, %v241, 0
        %v324 = vsel %vm250, %v242, 0
        %v327 = vsel %vm250, %v243, 0
        %v330 = vsel %vm250, %v244, 0
        %v333 = vsel %vm250, %v245, 0
        %v336 = vsel %vm250, %v246, 0
        %v339 = vsel %vm250, %v247, 0
        %v342 = vsel %vm250, %v248, 0
        %v345 = vsel %vm250, %v249, 0
        %347 = vmatprep.subr.mxu0 0.0
        %348 = vmatpush1.xpose.msra.mxu0 %v300
        %349 = vmatprep.subr.mxu0 0.0
        %350 = vmatpush1.xpose.msra.mxu0 %v303
        %351 = vmatprep.subr.mxu0 0.0
        %352 = vmatpush1.xpose.msra.mxu0 %v306
        %353 = vmatprep.subr.mxu0 0.0
        %354 = vmatpush1.xpose.msra.mxu0 %v309
        %355 = vmatprep.subr.mxu0 0.0
        %356 = vmatpush1.xpose.msra.mxu0 %v312
        %357 = vmatprep.subr.mxu0 0.0
        %358 = vmatpush1.xpose.msra.mxu0 %v315
        %359 = vmatprep.subr.mxu0 0.0
        %360 = vmatpush1.xpose.msra.mxu0 %v318
        %361 = vmatprep.subr.mxu0 0.0
        %362 = vmatpush1.xpose.msra.mxu0 %v321
        %363 = vmatprep.subr.mxu0 0.0
        %364 = vmatpush1.xpose.msra.mxu0 %v324
        %365 = vmatprep.subr.mxu0 0.0
        %366 = vmatpush1.xpose.msra.mxu0 %v327
        %367 = vmatprep.subr.mxu0 0.0
        %368 = vmatpush1.xpose.msra.mxu0 %v330
        %369 = vmatprep.subr.mxu0 0.0
        %370 = vmatpush1.xpose.msra.mxu0 %v333
        %371 = vmatprep.subr.mxu0 0.0
        %372 = vmatpush1.xpose.msra.mxu0 %v336
        %373 = vmatprep.subr.mxu0 0.0
        %374 = vmatpush1.xpose.msra.mxu0 %v339
        %375 = vmatprep.subr.mxu0 0.0
        %376 = vmatpush1.xpose.msra.mxu0 %v342
        %377 = vmatprep.subr.mxu0 0.0
        %378 = vmatpush1.xpose.msra.mxu0 %v345
        %379 = vmatprep.subr.mxu0 0.0
        %380 = vmatpush1.xpose.msra.mxu0 0.0
        %381 = vmatprep.subr.mxu0 0.0
        %382 = vmatpush1.xpose.msra.mxu0 0.0
        %383 = vmatprep.subr.mxu0 0.0
        %384 = vmatpush1.xpose.msra.mxu0 0.0
        %385 = vmatprep.subr.mxu0 0.0
        %386 = vmatpush1.xpose.msra.mxu0 0.0
        %387 = vmatprep.subr.mxu0 0.0
        %388 = vmatpush1.xpose.msra.mxu0 0.0
        %389 = vmatprep.subr.mxu0 0.0
        %390 = vmatpush1.xpose.msra.mxu0 0.0
        %391 = vmatprep.subr.mxu0 0.0
        %392 = vmatpush1.xpose.msra.mxu0 0.0
        %393 = vmatprep.subr.mxu0 0.0
        %394 = vmatpush1.xpose.msra.mxu0 0.0
        %395 = vmatprep.subr.mxu0 0.0
        %396 = vmatpush1.xpose.msra.mxu0 0.0
        %397 = vmatprep.subr.mxu0 0.0
        %398 = vmatpush1.xpose.msra.mxu0 0.0
        %399 = vmatprep.subr.mxu0 0.0
        %400 = vmatpush1.xpose.msra.mxu0 0.0
        %401 = vmatprep.subr.mxu0 0.0
        %402 = vmatpush1.xpose.msra.mxu0 0.0
        %403 = vmatprep.subr.mxu0 0.0
        %404 = vmatpush1.xpose.msra.mxu0 0.0
        %405 = vmatprep.subr.mxu0 0.0
        %406 = vmatpush1.xpose.msra.mxu0 0.0
        %407 = vmatprep.subr.mxu0 0.0
        %408 = vmatpush1.xpose.msra.mxu0 0.0
        %409 = vmatprep.subr.mxu0 0.0
        %410 = vmatpush1.xpose.msra.mxu0 0.0
        %411 = vmatprep.mubr.f32.mxu0 0.0
        %412 = vmatmul.mubr.f32.gmra.mrb[0].mxu0 %v252
        %v413 = vpop.f32.mrb[0].mxu0
        %v414 = vadd.f32 0.0, %v413
        %v415 = vpop.f32.mrb[0].mxu0
        %416 = vmatprep.mubr.f32.mxu0 0.0
        %417 = vmatmul.mubr.f32.gmra.mrb[0].mxu0 %v255
        %v418 = vpop.f32.mrb[0].mxu0
        %v419 = vadd.f32 0.0, %v418
        %v420 = vpop.f32.mrb[0].mxu0
        %421 = vmatprep.mubr.f32.mxu0 0.0
        %422 = vmatmul.mubr.f32.gmra.mrb[0].mxu0 %v258
        %v423 = vpop.f32.mrb[0].mxu0
        %v424 = vadd.f32 0.0, %v423
        %v425 = vpop.f32.mrb[0].mxu0
        %426 = vmatprep.mubr.f32.mxu0 0.0
        %427 = vmatmul.mubr.f32.gmra.mrb[0].mxu0 %v261
        %v428 = vpop.f32.mrb[0].mxu0
        %v429 = vadd.f32 0.0, %v428
        %v430 = vpop.f32.mrb[0].mxu0
        %431 = vmatprep.mubr.f32.mxu0 0.0
        %432 = vmatmul.mubr.f32.gmra.mrb[0].mxu0 %v264
        %v433 = vpop.f32.mrb[0].mxu0
        %v434 = vadd.f32 0.0, %v433
        %v435 = vpop.f32.mrb[0].mxu0
        %436 = vmatprep.mubr.f32.mxu0 0.0
        %437 = vmatmul.mubr.f32.gmra.mrb[0].mxu0 %v267
        %v438 = vpop.f32.mrb[0].mxu0
        %v439 = vadd.f32 0.0, %v438
        %v440 = vpop.f32.mrb[0].mxu0
        %441 = vmatprep.mubr.f32.mxu0 0.0
        %442 = vmatmul.mubr.f32.gmra.mrb[0].mxu0 %v270
        %v443 = vpop.f32.mrb[0].mxu0
        %v444 = vadd.f32 0.0, %v443
        %v445 = vpop.f32.mrb[0].mxu0
        %446 = vmatprep.mubr.f32.mxu0 0.0
        %447 = vmatmul.mubr.f32.gmra.mrb[0].mxu0 %v273
        %v448 = vpop.f32.mrb[0].mxu0
        %v449 = vadd.f32 0.0, %v448
        %v450 = vpop.f32.mrb[0].mxu0
        %451 = vmatprep.mubr.f32.mxu0 0.0
        %452 = vmatmul.mubr.f32.gmra.mrb[0].mxu0 %v276
        %v453 = vpop.f32.mrb[0].mxu0
        %v454 = vadd.f32 0.0, %v453
        %v455 = vpop.f32.mrb[0].mxu0
        %456 = vmatprep.mubr.f32.mxu0 0.0
        %457 = vmatmul.mubr.f32.gmra.mrb[0].mxu0 %v279
        %v458 = vpop.f32.mrb[0].mxu0
        %v459 = vadd.f32 0.0, %v458
        %v460 = vpop.f32.mrb[0].mxu0
        %461 = vmatprep.mubr.f32.mxu0 0.0
        %462 = vmatmul.mubr.f32.gmra.mrb[0].mxu0 %v282
        %v463 = vpop.f32.mrb[0].mxu0
        %v464 = vadd.f32 0.0, %v463
        %v465 = vpop.f32.mrb[0].mxu0
        %466 = vmatprep.mubr.f32.mxu0 0.0
        %467 = vmatmul.mubr.f32.gmra.mrb[0].mxu0 %v285
        %v468 = vpop.f32.mrb[0].mxu0
        %v469 = vadd.f32 0.0, %v468
        %v470 = vpop.f32.mrb[0].mxu0
        %471 = vmatprep.mubr.f32.mxu0 0.0
        %472 = vmatmul.mubr.f32.gmra.mrb[0].mxu0 %v288
        %v473 = vpop.f32.mrb[0].mxu0
        %v474 = vadd.f32 0.0, %v473
        %v475 = vpop.f32.mrb[0].mxu0
        %476 = vmatprep.mubr.f32.mxu0 0.0
        %477 = vmatmul.mubr.f32.gmra.mrb[0].mxu0 %v291
        %v478 = vpop.f32.mrb[0].mxu0
        %v479 = vadd.f32 0.0, %v478
        %v480 = vpop.f32.mrb[0].mxu0
        %481 = vmatprep.mubr.f32.mxu0 0.0
        %482 = vmatmul.mubr.f32.gmra.mrb[0].mxu0 %v294
        %v483 = vpop.f32.mrb[0].mxu0
        %v484 = vadd.f32 0.0, %v483
        %v485 = vpop.f32.mrb[0].mxu0
        %486 = vmatprep.mubr.f32.mxu0 0.0
        %487 = vmatmul.mubr.f32.gmra.mrb[0].mxu0 %v297
        %v488 = vpop.f32.mrb[0].mxu0
        %v489 = vadd.f32 0.0, %v488
        %v490 = vpop.f32.mrb[0].mxu0
        %491 = vdwg.mxu0
        %v492 = vxor.u32 %v414, 2147483648
        %v493 = vxor.u32 %v419, 2147483648
        %v494 = vxor.u32 %v424, 2147483648
        %v495 = vxor.u32 %v429, 2147483648
        %v496 = vxor.u32 %v434, 2147483648
        %v497 = vxor.u32 %v439, 2147483648
        %v498 = vxor.u32 %v444, 2147483648
        %v499 = vxor.u32 %v449, 2147483648
        %v500 = vxor.u32 %v454, 2147483648
        %v501 = vxor.u32 %v459, 2147483648
        %v502 = vxor.u32 %v464, 2147483648
        %v503 = vxor.u32 %v469, 2147483648
        %v504 = vxor.u32 %v474, 2147483648
        %v505 = vxor.u32 %v479, 2147483648
        %v506 = vxor.u32 %v484, 2147483648
        %v507 = vxor.u32 %v489, 2147483648
        %v508 = vmul.f32 %v492, 1.442695
        %v509 = vpow.pop %v508
        %v510 = vmul.f32 %v493, 1.442695
        %v511 = vpow.pop %v510
        %v512 = vmul.f32 %v494, 1.442695
        %v513 = vpow.pop %v512
        %v514 = vmul.f32 %v495, 1.442695
        %v515 = vpow.pop %v514
        %v516 = vmul.f32 %v496, 1.442695
        %v517 = vpow.pop %v516
        %v518 = vmul.f32 %v497, 1.442695
        %v519 = vpow.pop %v518
        %v520 = vmul.f32 %v498, 1.442695
        %v521 = vpow.pop %v520
        %v522 = vmul.f32 %v499, 1.442695
        %v523 = vpow.pop %v522
        %v524 = vmul.f32 %v500, 1.442695
        %v525 = vpow.pop %v524
        %v526 = vmul.f32 %v501, 1.442695
        %v527 = vpow.pop %v526
        %v528 = vmul.f32 %v502, 1.442695
        %v529 = vpow.pop %v528
        %v530 = vmul.f32 %v503, 1.442695
        %v531 = vpow.pop %v530
        %v532 = vmul.f32 %v504, 1.442695
        %v533 = vpow.pop %v532
        %v534 = vmul.f32 %v505, 1.442695
        %v535 = vpow.pop %v534
        %v536 = vmul.f32 %v506, 1.442695
        %v537 = vpow.pop %v536
        %v538 = vmul.f32 %v507, 1.442695
        %v539 = vpow.pop %v538
        %v540 = vadd.f32 %v509, 1.0
        %v541 = vadd.f32 %v511, 1.0
        %v542 = vadd.f32 %v513, 1.0
        %v543 = vadd.f32 %v515, 1.0
        %v544 = vadd.f32 %v517, 1.0
        %v545 = vadd.f32 %v519, 1.0
        %v546 = vadd.f32 %v521, 1.0
        %v547 = vadd.f32 %v523, 1.0
        %v548 = vadd.f32 %v525, 1.0
        %v549 = vadd.f32 %v527, 1.0
        %v550 = vadd.f32 %v529, 1.0
        %v551 = vadd.f32 %v531, 1.0
        %v552 = vadd.f32 %v533, 1.0
        %v553 = vadd.f32 %v535, 1.0
        %v554 = vadd.f32 %v537, 1.0
        %v555 = vadd.f32 %v539, 1.0
        %v556 = vrcp.pop %v540
        %v557 = vmul.f32 1.0, %v556
        %v558 = vrcp.pop %v541
        %v559 = vmul.f32 1.0, %v558
        %v560 = vrcp.pop %v542
        %v561 = vmul.f32 1.0, %v560
        %v562 = vrcp.pop %v543
        %v563 = vmul.f32 1.0, %v562
        %v564 = vrcp.pop %v544
        %v565 = vmul.f32 1.0, %v564
        %v566 = vrcp.pop %v545
        %v567 = vmul.f32 1.0, %v566
        %v568 = vrcp.pop %v546
        %v569 = vmul.f32 1.0, %v568
        %v570 = vrcp.pop %v547
        %v571 = vmul.f32 1.0, %v570
        %v572 = vrcp.pop %v548
        %v573 = vmul.f32 1.0, %v572
        %v574 = vrcp.pop %v549
        %v575 = vmul.f32 1.0, %v574
        %v576 = vrcp.pop %v550
        %v577 = vmul.f32 1.0, %v576
        %v578 = vrcp.pop %v551
        %v579 = vmul.f32 1.0, %v578
        %v580 = vrcp.pop %v552
        %v581 = vmul.f32 1.0, %v580
        %v582 = vrcp.pop %v553
        %v583 = vmul.f32 1.0, %v582
        %v584 = vrcp.pop %v554
        %v585 = vmul.f32 1.0, %v584
        %v586 = vrcp.pop %v555
        %v587 = vmul.f32 1.0, %v586
        %588 = vst [vmem:[%s196] sm:$0xff] %v557
        %589 = vst [vmem:[%s196 + $0x8] sm:$0xff] %v559
        %590 = vst [vmem:[%s196 + $0x10] sm:$0xff] %v561
        %591 = vst [vmem:[%s196 + $0x18] sm:$0xff] %v563
        %592 = vst [vmem:[%s196 + $0x20] sm:$0xff] %v565
        %593 = vst [vmem:[%s196 + $0x28] sm:$0xff] %v567
        %594 = vst [vmem:[%s196 + $0x30] sm:$0xff] %v569
        %595 = vst [vmem:[%s196 + $0x38] sm:$0xff] %v571
        %596 = vst [vmem:[%s196 + $0x40] sm:$0xff] %v573
        %597 = vst [vmem:[%s196 + $0x48] sm:$0xff] %v575
        %598 = vst [vmem:[%s196 + $0x50] sm:$0xff] %v577
        %599 = vst [vmem:[%s196 + $0x58] sm:$0xff] %v579
        %600 = vst [vmem:[%s196 + $0x60] sm:$0xff] %v581
        %601 = vst [vmem:[%s196 + $0x68] sm:$0xff] %v583
        %602 = vst [vmem:[%s196 + $0x70] sm:$0xff] %v585
        %603 = vst [vmem:[%s196 + $0x78] sm:$0xff] %v587
        %s604 = sand.u32 %s103, 1
        %s605 = scalar_lea.sflag [#allocation3], %s604
        %s606 = sand.u32 %s103, 1
        %s607 = smul.addr %s606, 128
        %s608 = scalar_lea.vmem [#allocation2], %s607
        // Predicated region
        $region29: #{tpu_custom_call.1} parent=27 // pred_check
          %p609 = pneg %p113
        $region30: #{tpu_custom_call.1} parent=27 // pred_check_branch
          %611 = sbr.rel (%p609) target = $region32
        $region31: #{tpu_custom_call.1} parent=27 // pred_region
          %s612 = smul.u32 16, %s23
          %s614 = ssub.s32 2048, 2048
          %615 = vsyncadd %s605, %s614
          %s616 = sadd.s32 %s22, %s612
          %s617 = smul.addr %s21, 16
          %s618 = sadd.s32 %s616, %s617
          %s619 = smul.addr %s618, 128
          %s620 = scalar_lea.hbm %s2, %s619
          %s621 = sshll.u32 %s608, 4
          %s622 = int_to_ptr.vmem [resolvable:$true] %s621
          %627 = dma.vmem_to_hbm [thread:$0]  %s622, 2048, %s620, %s605, 128, 128, 8
        $region32: #{tpu_custom_call.1} parent=27 // pred_fallthru
          _
      $region28: #{tpu_custom_call.1} parent=5 // pred_fallthru
        _
      %p628 = scmp.le.s32.totalorder 2, %s11
      // Predicated region
      $region33: #{tpu_custom_call.1} parent=5 // pred_check
        %p629 = pneg %p628
      $region34: #{tpu_custom_call.1} parent=5 // pred_check_branch
        %631 = sbr.rel (%p629) target = $region36
      $region35: #{tpu_custom_call.1} parent=5 // pred_region
        %s632 = ssub.s32 %s11, 2
        // Predicated region
        $region37: #{tpu_custom_call.1} parent=35 // pred_check
          %p633 = pneg %p119
        $region38: #{tpu_custom_call.1} parent=35 // pred_check_branch
          %635 = sbr.rel (%p633) target = $region40
        $region39: #{tpu_custom_call.1} parent=35 // pred_region
          %s636 = sand.u32 %s104, 1
          %s637 = scalar_lea.sflag [#allocation3], %s636
          %s638 = sand.u32 %s104, 1
          %s639 = smul.addr %s638, 128
          %s640 = scalar_lea.vmem [#allocation2], %s639
          %641 = dma.done %s637, 2048
        $region40: #{tpu_custom_call.1} parent=35 // pred_fallthru
          _
      $region36: #{tpu_custom_call.1} parent=5 // pred_fallthru
        _
    $region6: #{tpu_custom_call.1} parent=1 // loop_footer
      %s15 = sadd.s32 1, %s11
    $region7: #{tpu_custom_call.1} parent=1 // loop_footer_branch
      %10 = sbr.rel target = $region3
    $region8: #{tpu_custom_call.1} parent=1 // loop_exit
      _
    %642 = vsyncpa [#allocation3], 1
    %s643 = scalar_lea.sflag [#allocation3], 1
    %644 = vsyncpa %s643, 1

</llo_original>
